<compile_context>
chip_gen: v7x
topology: tpu7x:2x2x1
jax: 0.10.0
libtpu: 0.0.40
codegen_flags: <defaults>
</compile_context>

<pallas_src>
import functools

import jax
import jax.numpy as jnp
from jax import lax
from jax.experimental import pallas as pl
from jax.experimental.pallas import tpu as pltpu

HEAD_DIM = 64


def _pick_block_b(n, k, target_rows=256):
    """Largest divisor of n with block_b * k <= target_rows (at least 1)."""
    bb = max(1, min(n, max(1, target_rows // max(k, 1))))
    while n % bb:
        bb -= 1
    return bb


def self_attention_kernel(x_ref, gamma_ref, beta_ref, wqkv_ref, wout_ref,
                          bout_ref, lscale_ref, o_ref, attn_buf,
                          *, block_b, seq, heads, scale, eps):
    B, K = block_b, seq
    BK = B * K
    C = x_ref.shape[-1]
    hd = heads * HEAD_DIM

    # Flatten (B, K, C) -> (B*K, C): feed the MXU B*K LHS rows at once for the
    # LN / QKV / output-projection matmuls instead of K rows per grid step.
    x = x_ref[...].reshape(BK, C)                        # f32, pre-norm (skip)

    # --- LayerNorm over last dim (f32 on the VPU) ---
    mean = jnp.mean(x, axis=-1, keepdims=True)
    xc = x - mean
    var = jnp.mean(xc * xc, axis=-1, keepdims=True)
    xn = xc * lax.rsqrt(var + eps)
    xn = xn * gamma_ref[...] + beta_ref[...]             # (BK, C), bcast (1, C)

    # --- QKV projection: bf16 operands, f32 accumulation on the MXU ---
    qkv = jnp.dot(xn.astype(jnp.bfloat16), wqkv_ref[...],
                  preferred_element_type=jnp.float32)    # (BK, 3*H*D) f32
    # Fold the 1/sqrt(D) scale into q once.
    q = (qkv[:, 0 * hd:1 * hd] * scale).astype(jnp.bfloat16)
    k = qkv[:, 1 * hd:2 * hd].astype(jnp.bfloat16)
    v = qkv[:, 2 * hd:3 * hd].astype(jnp.bfloat16)

    # --- attention per (batch-in-block, head); static unroll, static offsets ---
    # TODO(synk): for production K (thousands) / v7x's 64 MiB VMEM, tile the
    # sequence flash-style (q-row tiles, K/V streamed on an extra grid axis) and
    # add a second parallel grid axis so both v7x TensorCores get work.
    for b in range(B):
        rows = slice(b * K, (b + 1) * K)
        for h in range(heads):
            cols = slice(h * HEAD_DIM, (h + 1) * HEAD_DIM)
            qh, kh, vh = q[rows, cols], k[rows, cols], v[rows, cols]
            # q @ k^T without materializing the transpose.
            att = lax.dot_general(qh, kh, (((1,), (1,)), ((), ())),
                                  preferred_element_type=jnp.float32)   # (K, K)
            m = jnp.max(att, axis=-1, keepdims=True)
            p = jnp.exp(att - m)                                        # f32
            s = jnp.sum(p, axis=-1, keepdims=True)
            p = p * pl.reciprocal(s, approx=True)                       # EUP slot
            oh = jnp.dot(p.astype(jnp.bfloat16), vh,
                         preferred_element_type=jnp.float32)            # (K, D)
            attn_buf[rows, cols] = oh            # static 64-lane-offset store

    # --- output projection + bias + layer scale + residual (f32) ---
    out = jnp.dot(attn_buf[...].astype(jnp.bfloat16), wout_ref[...],
                  preferred_element_type=jnp.float32)
    out = (out + bout_ref[...]) * lscale_ref[...] + x
    o_ref[...] = out.reshape(B, K, C).astype(o_ref.dtype)


def self_attention(x, gamma, beta, wqkv, wout, bout, lscale, *, heads, eps=1e-5):
    N, K, C = x.shape
    hd = heads * HEAD_DIM
    scale = HEAD_DIM ** (-0.5)
    block_b = _pick_block_b(N, K)
    grid = (N // block_b,)

    # bf16 weights: half the DMA bytes, full-rate MXU on v5e/v6e/v7x.
    wqkv_bf = wqkv.astype(jnp.bfloat16)
    wout_bf = wout.astype(jnp.bfloat16)

    kernel = functools.partial(self_attention_kernel, block_b=block_b, seq=K,
                               heads=heads, scale=scale, eps=eps)
    return pl.pallas_call(
        kernel,
        out_shape=jax.ShapeDtypeStruct((N, K, C), jnp.float32),
        grid=grid,
        in_specs=[
            pl.BlockSpec((block_b, K, C), lambda n: (n, 0, 0)),   # x
            pl.BlockSpec((1, C), lambda n: (0, 0)),               # ln gamma
            pl.BlockSpec((1, C), lambda n: (0, 0)),               # ln beta
            pl.BlockSpec((C, 3 * hd), lambda n: (0, 0)),          # W_qkv (bf16)
            pl.BlockSpec((hd, C), lambda n: (0, 0)),              # W_out (bf16)
            pl.BlockSpec((1, C), lambda n: (0, 0)),               # b_out
            pl.BlockSpec((1, C), lambda n: (0, 0)),               # layer_scale
        ],
        out_specs=pl.BlockSpec((block_b, K, C), lambda n: (n, 0, 0)),
        scratch_shapes=[pltpu.VMEM((block_b * K, hd), jnp.float32)],
        compiler_params=pltpu.CompilerParams(
            dimension_semantics=("parallel",),
            vmem_limit_bytes=48 * 1024 * 1024),
    )(x, gamma, beta, wqkv_bf, wout_bf, bout, lscale)


def reference(x, gamma, beta, wqkv, wout, bout, lscale, *, heads, eps=1e-5):
    N, K, C = x.shape
    skip = x
    mean = jnp.mean(x, axis=-1, keepdims=True)
    var = jnp.mean((x - mean) ** 2, axis=-1, keepdims=True)
    xn = (x - mean) / jnp.sqrt(var + eps) * gamma[0] + beta[0]
    qkv = xn @ wqkv                                                  # (N, K, 3*H*D)
    qkv = qkv.reshape(N, K, 3, heads, HEAD_DIM).transpose(2, 0, 3, 1, 4)
    q, k, v = qkv[0], qkv[1], qkv[2]                                 # (N, H, K, D)
    att = jnp.einsum('nhid,nhjd->nhij', q, k) * (HEAD_DIM ** -0.5)
    att = jax.nn.softmax(att, axis=-1)
    out = jnp.einsum('nhij,nhjd->nhid', att, v)
    out = out.transpose(0, 2, 1, 3).reshape(N, K, heads * HEAD_DIM)
    out = out @ wout + bout[0]
    return out * lscale[0] + skip


if __name__ == "__main__":
    dim = 128                 # heads = dim // 64 = 2
    heads = dim // HEAD_DIM
    N, K = 2, 8
    layer_scale_init = 1e-2   # visible attention branch so the check is meaningful

    key = jax.random.PRNGKey(0)
    kx, kq, ko, kb = jax.random.split(key, 4)

    x = jax.random.normal(kx, (N, K, dim), dtype=jnp.float32)
    gamma = jnp.ones((1, dim), jnp.float32)
    beta = jnp.zeros((1, dim), jnp.float32)
    wqkv = (0.02 * jax.random.normal(kq, (dim, 3 * heads * HEAD_DIM))).astype(jnp.float32)
    wout = (0.02 * jax.random.normal(ko, (heads * HEAD_DIM, dim))).astype(jnp.float32)
    bout = (0.02 * jax.random.normal(kb, (1, dim))).astype(jnp.float32)
    lscale = (layer_scale_init * jnp.ones((1, dim))).astype(jnp.float32)

    out = self_attention(x, gamma, beta, wqkv, wout, bout, lscale, heads=heads)
    out = jax.block_until_ready(out)

    ref = reference(x, gamma, beta, wqkv, wout, bout, lscale, heads=heads)

    # Full output (residual-dominated); bf16 matmuls keep this well under 1e-3.
    assert jnp.allclose(out, ref, atol=1e-3, rtol=1e-3), "mismatch vs JAX reference"
    # Attention branch alone (residual removed) — meaningful bf16-level check.
    db, dr = out - x, ref - x
    rel = jnp.linalg.norm(db - dr) / (jnp.linalg.norm(dr) + 1e-12)
    assert rel < 5e-2, f"attention-branch relative error too high: {rel}"

    print("KERNEL_OK")
</pallas_src>

<mosaic_0001>
module attributes {stable_mosaic.version = 11 : i64} {
  func.func @self_attention_kernel(%arg0: i32, %arg1: memref<2x8x128xf32, #tpu.memory_space<vmem>>, %arg2: memref<1x128xf32, #tpu.memory_space<vmem>>, %arg3: memref<1x128xf32, #tpu.memory_space<vmem>>, %arg4: memref<128x384xbf16, #tpu.memory_space<vmem>>, %arg5: memref<128x128xbf16, #tpu.memory_space<vmem>>, %arg6: memref<1x128xf32, #tpu.memory_space<vmem>>, %arg7: memref<1x128xf32, #tpu.memory_space<vmem>>, %arg8: memref<2x8x128xf32, #tpu.memory_space<vmem>>, %arg9: memref<16x128xf32, #tpu.memory_space<vmem>>) attributes {dimension_semantics = [#tpu.dimension_semantics<parallel>], iteration_bounds = array<i64: 1>, scalar_prefetch = 0 : i64, scratch_operands = 1 : i64, tpu.core_type = #tpu.core_type<tc>, window_params = [{transform_indices = @transform_0, window_bounds = array<i64: 2, 8, 128>}, {pipeline_mode = #tpu.pipeline_mode<synchronous>, transform_indices = @transform_1, window_bounds = array<i64: 1, 128>}, {pipeline_mode = #tpu.pipeline_mode<synchronous>, transform_indices = @transform_2, window_bounds = array<i64: 1, 128>}, {pipeline_mode = #tpu.pipeline_mode<synchronous>, transform_indices = @transform_3, window_bounds = array<i64: 128, 384>}, {pipeline_mode = #tpu.pipeline_mode<synchronous>, transform_indices = @transform_4, window_bounds = array<i64: 128, 128>}, {pipeline_mode = #tpu.pipeline_mode<synchronous>, transform_indices = @transform_5, window_bounds = array<i64: 1, 128>}, {pipeline_mode = #tpu.pipeline_mode<synchronous>, transform_indices = @transform_6, window_bounds = array<i64: 1, 128>}, {transform_indices = @transform_7, window_bounds = array<i64: 2, 8, 128>}]} {
    %c0 = arith.constant 0 : index
    %c0_0 = arith.constant 0 : index
    %c0_1 = arith.constant 0 : index
    %0 = vector.load %arg1[%c0, %c0_0, %c0_1] : memref<2x8x128xf32, #tpu.memory_space<vmem>>, vector<2x8x128xf32>
    %1 = vector.shape_cast %0 : vector<2x8x128xf32> to vector<16x128xf32>
    %cst = arith.constant dense<0.000000e+00> : vector<16xf32>
    %2 = vector.multi_reduction <add>, %1, %cst [1] : vector<16x128xf32> to vector<16xf32>
    %3 = vector.shape_cast %2 : vector<16xf32> to vector<16x1xf32>
    %cst_2 = arith.constant 1.280000e+02 : f32
    %4 = vector.broadcast %cst_2 : f32 to vector<16x1xf32>
    %5 = arith.divf %3, %4 : vector<16x1xf32>
    %6 = vector.broadcast %5 : vector<16x1xf32> to vector<16x128xf32>
    %7 = arith.subf %1, %6 : vector<16x128xf32>
    %8 = arith.mulf %7, %7 : vector<16x128xf32>
    %cst_3 = arith.constant dense<0.000000e+00> : vector<16xf32>
    %9 = vector.multi_reduction <add>, %8, %cst_3 [1] : vector<16x128xf32> to vector<16xf32>
    %10 = vector.shape_cast %9 : vector<16xf32> to vector<16x1xf32>
    %cst_4 = arith.constant 1.280000e+02 : f32
    %11 = vector.broadcast %cst_4 : f32 to vector<16x1xf32>
    %12 = arith.divf %10, %11 : vector<16x1xf32>
    %cst_5 = arith.constant 9.99999974E-6 : f32
    %13 = vector.broadcast %cst_5 : f32 to vector<16x1xf32>
    %14 = arith.addf %12, %13 : vector<16x1xf32>
    %15 = math.rsqrt %14 : vector<16x1xf32>
    %16 = vector.broadcast %15 : vector<16x1xf32> to vector<16x128xf32>
    %17 = arith.mulf %7, %16 : vector<16x128xf32>
    %c0_6 = arith.constant 0 : index
    %c0_7 = arith.constant 0 : index
    %18 = vector.load %arg2[%c0_6, %c0_7] : memref<1x128xf32, #tpu.memory_space<vmem>>, vector<1x128xf32>
    %19 = vector.broadcast %18 : vector<1x128xf32> to vector<16x128xf32>
    %20 = arith.mulf %17, %19 : vector<16x128xf32>
    %c0_8 = arith.constant 0 : index
    %c0_9 = arith.constant 0 : index
    %21 = vector.load %arg3[%c0_8, %c0_9] : memref<1x128xf32, #tpu.memory_space<vmem>>, vector<1x128xf32>
    %22 = vector.broadcast %21 : vector<1x128xf32> to vector<16x128xf32>
    %23 = arith.addf %20, %22 : vector<16x128xf32>
    %24 = arith.truncf %23 : vector<16x128xf32> to vector<16x128xbf16>
    %c0_10 = arith.constant 0 : index
    %c0_11 = arith.constant 0 : index
    %25 = vector.load %arg4[%c0_10, %c0_11] : memref<128x384xbf16, #tpu.memory_space<vmem>>, vector<128x384xbf16>
    %cst_12 = arith.constant dense<0.000000e+00> : vector<16x384xf32>
    %26 = tpu.matmul %24, %25, %cst_12 {dimension_numbers = #tpu.dot_dimension_numbers<[1], [0], [0], [1], [0, 0, 1, 1], [], []>} : vector<16x128xbf16>, vector<128x384xbf16>, vector<16x384xf32> -> vector<16x384xf32>
    %27 = vector.extract_strided_slice %26 {offsets = [0, 0], sizes = [16, 128], strides = [1, 1]} : vector<16x384xf32> to vector<16x128xf32>
    %cst_13 = arith.constant 1.250000e-01 : f32
    %28 = vector.broadcast %cst_13 : f32 to vector<16x128xf32>
    %29 = arith.mulf %27, %28 : vector<16x128xf32>
    %30 = arith.truncf %29 : vector<16x128xf32> to vector<16x128xbf16>
    %31 = vector.extract_strided_slice %26 {offsets = [0, 128], sizes = [16, 128], strides = [1, 1]} : vector<16x384xf32> to vector<16x128xf32>
    %32 = arith.truncf %31 : vector<16x128xf32> to vector<16x128xbf16>
    %33 = vector.extract_strided_slice %26 {offsets = [0, 256], sizes = [16, 128], strides = [1, 1]} : vector<16x384xf32> to vector<16x128xf32>
    %34 = arith.truncf %33 : vector<16x128xf32> to vector<16x128xbf16>
    %35 = vector.extract_strided_slice %30 {offsets = [0, 0], sizes = [8, 64], strides = [1, 1]} : vector<16x128xbf16> to vector<8x64xbf16>
    %36 = vector.extract_strided_slice %32 {offsets = [0, 0], sizes = [8, 64], strides = [1, 1]} : vector<16x128xbf16> to vector<8x64xbf16>
    %37 = vector.extract_strided_slice %34 {offsets = [0, 0], sizes = [8, 64], strides = [1, 1]} : vector<16x128xbf16> to vector<8x64xbf16>
    %cst_14 = arith.constant dense<0.000000e+00> : vector<8x8xf32>
    %38 = tpu.matmul %35, %36, %cst_14 {dimension_numbers = #tpu.dot_dimension_numbers<[1], [1], [0], [0], [0, 0, 1, 0], [], []>} : vector<8x64xbf16>, vector<8x64xbf16>, vector<8x8xf32> -> vector<8x8xf32>
    %cst_15 = arith.constant dense<0xFF800000> : vector<8xf32>
    %39 = vector.multi_reduction <maximumf>, %38, %cst_15 [1] : vector<8x8xf32> to vector<8xf32>
    %40 = vector.shape_cast %39 : vector<8xf32> to vector<8x1xf32>
    %41 = vector.broadcast %40 : vector<8x1xf32> to vector<8x8xf32>
    %42 = arith.subf %38, %41 : vector<8x8xf32>
    %43 = math.exp %42 : vector<8x8xf32>
    %cst_16 = arith.constant dense<0.000000e+00> : vector<8xf32>
    %44 = vector.multi_reduction <add>, %43, %cst_16 [1] : vector<8x8xf32> to vector<8xf32>
    %45 = vector.shape_cast %44 : vector<8xf32> to vector<8x1xf32>
    %46 = tpu.reciprocal %45 {approx = true} : vector<8x1xf32> -> vector<8x1xf32>
    %47 = vector.broadcast %46 : vector<8x1xf32> to vector<8x8xf32>
    %48 = arith.mulf %43, %47 : vector<8x8xf32>
    %49 = arith.truncf %48 : vector<8x8xf32> to vector<8x8xbf16>
    %cst_17 = arith.constant dense<0.000000e+00> : vector<8x64xf32>
    %50 = tpu.matmul %49, %37, %cst_17 {dimension_numbers = #tpu.dot_dimension_numbers<[1], [0], [0], [1], [0, 0, 1, 1], [], []>} : vector<8x8xbf16>, vector<8x64xbf16>, vector<8x64xf32> -> vector<8x64xf32>
    %c0_18 = arith.constant 0 : index
    %c0_19 = arith.constant 0 : index
    %51 = vector.load %arg9[%c0_18, %c0_19] : memref<16x128xf32, #tpu.memory_space<vmem>>, vector<8x64xf32>
    tpu.vector_store %arg9[%c0_18, %c0_19], %50 {strides = array<i32>} : memref<16x128xf32, #tpu.memory_space<vmem>>, vector<8x64xf32>,
    %52 = vector.extract_strided_slice %30 {offsets = [0, 64], sizes = [8, 64], strides = [1, 1]} : vector<16x128xbf16> to vector<8x64xbf16>
    %53 = vector.extract_strided_slice %32 {offsets = [0, 64], sizes = [8, 64], strides = [1, 1]} : vector<16x128xbf16> to vector<8x64xbf16>
    %54 = vector.extract_strided_slice %34 {offsets = [0, 64], sizes = [8, 64], strides = [1, 1]} : vector<16x128xbf16> to vector<8x64xbf16>
    %cst_20 = arith.constant dense<0.000000e+00> : vector<8x8xf32>
    %55 = tpu.matmul %52, %53, %cst_20 {dimension_numbers = #tpu.dot_dimension_numbers<[1], [1], [0], [0], [0, 0, 1, 0], [], []>} : vector<8x64xbf16>, vector<8x64xbf16>, vector<8x8xf32> -> vector<8x8xf32>
    %cst_21 = arith.constant dense<0xFF800000> : vector<8xf32>
    %56 = vector.multi_reduction <maximumf>, %55, %cst_21 [1] : vector<8x8xf32> to vector<8xf32>
    %57 = vector.shape_cast %56 : vector<8xf32> to vector<8x1xf32>
    %58 = vector.broadcast %57 : vector<8x1xf32> to vector<8x8xf32>
    %59 = arith.subf %55, %58 : vector<8x8xf32>
    %60 = math.exp %59 : vector<8x8xf32>
    %cst_22 = arith.constant dense<0.000000e+00> : vector<8xf32>
    %61 = vector.multi_reduction <add>, %60, %cst_22 [1] : vector<8x8xf32> to vector<8xf32>
    %62 = vector.shape_cast %61 : vector<8xf32> to vector<8x1xf32>
    %63 = tpu.reciprocal %62 {approx = true} : vector<8x1xf32> -> vector<8x1xf32>
    %64 = vector.broadcast %63 : vector<8x1xf32> to vector<8x8xf32>
    %65 = arith.mulf %60, %64 : vector<8x8xf32>
    %66 = arith.truncf %65 : vector<8x8xf32> to vector<8x8xbf16>
    %cst_23 = arith.constant dense<0.000000e+00> : vector<8x64xf32>
    %67 = tpu.matmul %66, %54, %cst_23 {dimension_numbers = #tpu.dot_dimension_numbers<[1], [0], [0], [1], [0, 0, 1, 1], [], []>} : vector<8x8xbf16>, vector<8x64xbf16>, vector<8x64xf32> -> vector<8x64xf32>
    %c0_24 = arith.constant 0 : index
    %c64 = arith.constant 64 : index
    %68 = vector.load %arg9[%c0_24, %c64] : memref<16x128xf32, #tpu.memory_space<vmem>>, vector<8x64xf32>
    tpu.vector_store %arg9[%c0_24, %c64], %67 {strides = array<i32>} : memref<16x128xf32, #tpu.memory_space<vmem>>, vector<8x64xf32>,
    %69 = vector.extract_strided_slice %30 {offsets = [8, 0], sizes = [8, 64], strides = [1, 1]} : vector<16x128xbf16> to vector<8x64xbf16>
    %70 = vector.extract_strided_slice %32 {offsets = [8, 0], sizes = [8, 64], strides = [1, 1]} : vector<16x128xbf16> to vector<8x64xbf16>
    %71 = vector.extract_strided_slice %34 {offsets = [8, 0], sizes = [8, 64], strides = [1, 1]} : vector<16x128xbf16> to vector<8x64xbf16>
    %cst_25 = arith.constant dense<0.000000e+00> : vector<8x8xf32>
    %72 = tpu.matmul %69, %70, %cst_25 {dimension_numbers = #tpu.dot_dimension_numbers<[1], [1], [0], [0], [0, 0, 1, 0], [], []>} : vector<8x64xbf16>, vector<8x64xbf16>, vector<8x8xf32> -> vector<8x8xf32>
    %cst_26 = arith.constant dense<0xFF800000> : vector<8xf32>
    %73 = vector.multi_reduction <maximumf>, %72, %cst_26 [1] : vector<8x8xf32> to vector<8xf32>
    %74 = vector.shape_cast %73 : vector<8xf32> to vector<8x1xf32>
    %75 = vector.broadcast %74 : vector<8x1xf32> to vector<8x8xf32>
    %76 = arith.subf %72, %75 : vector<8x8xf32>
    %77 = math.exp %76 : vector<8x8xf32>
    %cst_27 = arith.constant dense<0.000000e+00> : vector<8xf32>
    %78 = vector.multi_reduction <add>, %77, %cst_27 [1] : vector<8x8xf32> to vector<8xf32>
    %79 = vector.shape_cast %78 : vector<8xf32> to vector<8x1xf32>
    %80 = tpu.reciprocal %79 {approx = true} : vector<8x1xf32> -> vector<8x1xf32>
    %81 = vector.broadcast %80 : vector<8x1xf32> to vector<8x8xf32>
    %82 = arith.mulf %77, %81 : vector<8x8xf32>
    %83 = arith.truncf %82 : vector<8x8xf32> to vector<8x8xbf16>
    %cst_28 = arith.constant dense<0.000000e+00> : vector<8x64xf32>
    %84 = tpu.matmul %83, %71, %cst_28 {dimension_numbers = #tpu.dot_dimension_numbers<[1], [0], [0], [1], [0, 0, 1, 1], [], []>} : vector<8x8xbf16>, vector<8x64xbf16>, vector<8x64xf32> -> vector<8x64xf32>
    %c8 = arith.constant 8 : index
    %c0_29 = arith.constant 0 : index
    %85 = vector.load %arg9[%c8, %c0_29] : memref<16x128xf32, #tpu.memory_space<vmem>>, vector<8x64xf32>
    tpu.vector_store %arg9[%c8, %c0_29], %84 {strides = array<i32>} : memref<16x128xf32, #tpu.memory_space<vmem>>, vector<8x64xf32>,
    %86 = vector.extract_strided_slice %30 {offsets = [8, 64], sizes = [8, 64], strides = [1, 1]} : vector<16x128xbf16> to vector<8x64xbf16>
    %87 = vector.extract_strided_slice %32 {offsets = [8, 64], sizes = [8, 64], strides = [1, 1]} : vector<16x128xbf16> to vector<8x64xbf16>
    %88 = vector.extract_strided_slice %34 {offsets = [8, 64], sizes = [8, 64], strides = [1, 1]} : vector<16x128xbf16> to vector<8x64xbf16>
    %cst_30 = arith.constant dense<0.000000e+00> : vector<8x8xf32>
    %89 = tpu.matmul %86, %87, %cst_30 {dimension_numbers = #tpu.dot_dimension_numbers<[1], [1], [0], [0], [0, 0, 1, 0], [], []>} : vector<8x64xbf16>, vector<8x64xbf16>, vector<8x8xf32> -> vector<8x8xf32>
    %cst_31 = arith.constant dense<0xFF800000> : vector<8xf32>
    %90 = vector.multi_reduction <maximumf>, %89, %cst_31 [1] : vector<8x8xf32> to vector<8xf32>
    %91 = vector.shape_cast %90 : vector<8xf32> to vector<8x1xf32>
    %92 = vector.broadcast %91 : vector<8x1xf32> to vector<8x8xf32>
    %93 = arith.subf %89, %92 : vector<8x8xf32>
    %94 = math.exp %93 : vector<8x8xf32>
    %cst_32 = arith.constant dense<0.000000e+00> : vector<8xf32>
    %95 = vector.multi_reduction <add>, %94, %cst_32 [1] : vector<8x8xf32> to vector<8xf32>
    %96 = vector.shape_cast %95 : vector<8xf32> to vector<8x1xf32>
    %97 = tpu.reciprocal %96 {approx = true} : vector<8x1xf32> -> vector<8x1xf32>
    %98 = vector.broadcast %97 : vector<8x1xf32> to vector<8x8xf32>
    %99 = arith.mulf %94, %98 : vector<8x8xf32>
    %100 = arith.truncf %99 : vector<8x8xf32> to vector<8x8xbf16>
    %cst_33 = arith.constant dense<0.000000e+00> : vector<8x64xf32>
    %101 = tpu.matmul %100, %88, %cst_33 {dimension_numbers = #tpu.dot_dimension_numbers<[1], [0], [0], [1], [0, 0, 1, 1], [], []>} : vector<8x8xbf16>, vector<8x64xbf16>, vector<8x64xf32> -> vector<8x64xf32>
    %c8_34 = arith.constant 8 : index
    %c64_35 = arith.constant 64 : index
    %102 = vector.load %arg9[%c8_34, %c64_35] : memref<16x128xf32, #tpu.memory_space<vmem>>, vector<8x64xf32>
    tpu.vector_store %arg9[%c8_34, %c64_35], %101 {strides = array<i32>} : memref<16x128xf32, #tpu.memory_space<vmem>>, vector<8x64xf32>,
    %c0_36 = arith.constant 0 : index
    %c0_37 = arith.constant 0 : index
    %103 = vector.load %arg9[%c0_36, %c0_37] : memref<16x128xf32, #tpu.memory_space<vmem>>, vector<16x128xf32>
    %104 = arith.truncf %103 : vector<16x128xf32> to vector<16x128xbf16>
    %c0_38 = arith.constant 0 : index
    %c0_39 = arith.constant 0 : index
    %105 = vector.load %arg5[%c0_38, %c0_39] : memref<128x128xbf16, #tpu.memory_space<vmem>>, vector<128x128xbf16>
    %cst_40 = arith.constant dense<0.000000e+00> : vector<16x128xf32>
    %106 = tpu.matmul %104, %105, %cst_40 {dimension_numbers = #tpu.dot_dimension_numbers<[1], [0], [0], [1], [0, 0, 1, 1], [], []>} : vector<16x128xbf16>, vector<128x128xbf16>, vector<16x128xf32> -> vector<16x128xf32>
    %c0_41 = arith.constant 0 : index
    %c0_42 = arith.constant 0 : index
    %107 = vector.load %arg6[%c0_41, %c0_42] : memref<1x128xf32, #tpu.memory_space<vmem>>, vector<1x128xf32>
    %108 = vector.broadcast %107 : vector<1x128xf32> to vector<16x128xf32>
    %109 = arith.addf %106, %108 : vector<16x128xf32>
    %c0_43 = arith.constant 0 : index
    %c0_44 = arith.constant 0 : index
    %110 = vector.load %arg7[%c0_43, %c0_44] : memref<1x128xf32, #tpu.memory_space<vmem>>, vector<1x128xf32>
    %111 = vector.broadcast %110 : vector<1x128xf32> to vector<16x128xf32>
    %112 = arith.mulf %109, %111 : vector<16x128xf32>
    %113 = arith.addf %112, %1 : vector<16x128xf32>
    %114 = vector.shape_cast %113 : vector<16x128xf32> to vector<2x8x128xf32>
    %c0_45 = arith.constant 0 : index
    %c0_46 = arith.constant 0 : index
    %c0_47 = arith.constant 0 : index
    %115 = vector.load %arg8[%c0_45, %c0_46, %c0_47] : memref<2x8x128xf32, #tpu.memory_space<vmem>>, vector<2x8x128xf32>
    tpu.vector_store %arg8[%c0_45, %c0_46, %c0_47], %114 {strides = array<i32>} : memref<2x8x128xf32, #tpu.memory_space<vmem>>, vector<2x8x128xf32>,
    return
  }
  func.func @transform_0(%arg0: i32) -> (i32, i32, i32) {
    %c0_i32 = arith.constant 0 : i32
    %c0_i32_0 = arith.constant 0 : i32
    %c0_i32_1 = arith.constant 0 : i32
    return %arg0, %c0_i32, %c0_i32_0 : i32, i32, i32
  }
  func.func @transform_1(%arg0: i32) -> (i32, i32) {
    %c0_i32 = arith.constant 0 : i32
    %c0_i32_0 = arith.constant 0 : i32
    %c0_i32_1 = arith.constant 0 : i32
    return %c0_i32, %c0_i32_0 : i32, i32
  }
  func.func @transform_2(%arg0: i32) -> (i32, i32) {
    %c0_i32 = arith.constant 0 : i32
    %c0_i32_0 = arith.constant 0 : i32
    %c0_i32_1 = arith.constant 0 : i32
    return %c0_i32, %c0_i32_0 : i32, i32
  }
  func.func @transform_3(%arg0: i32) -> (i32, i32) {
    %c0_i32 = arith.constant 0 : i32
    %c0_i32_0 = arith.constant 0 : i32
    %c0_i32_1 = arith.constant 0 : i32
    return %c0_i32, %c0_i32_0 : i32, i32
  }
  func.func @transform_4(%arg0: i32) -> (i32, i32) {
    %c0_i32 = arith.constant 0 : i32
    %c0_i32_0 = arith.constant 0 : i32
    %c0_i32_1 = arith.constant 0 : i32
    return %c0_i32, %c0_i32_0 : i32, i32
  }
  func.func @transform_5(%arg0: i32) -> (i32, i32) {
    %c0_i32 = arith.constant 0 : i32
    %c0_i32_0 = arith.constant 0 : i32
    %c0_i32_1 = arith.constant 0 : i32
    return %c0_i32, %c0_i32_0 : i32, i32
  }
  func.func @transform_6(%arg0: i32) -> (i32, i32) {
    %c0_i32 = arith.constant 0 : i32
    %c0_i32_0 = arith.constant 0 : i32
    %c0_i32_1 = arith.constant 0 : i32
    return %c0_i32, %c0_i32_0 : i32, i32
  }
  func.func @transform_7(%arg0: i32) -> (i32, i32, i32) {
    %c0_i32 = arith.constant 0 : i32
    %c0_i32_0 = arith.constant 0 : i32
    %c0_i32_1 = arith.constant 0 : i32
    return %arg0, %c0_i32, %c0_i32_0 : i32, i32, i32
  }
}

</mosaic_0001>

<llo_original>
// kernel: tpu_custom_call.1
$region0: #{tpu_custom_call.1}
  #allocation0 [shape = 'u32[]', space=smem, size = 0x4, offset = 0x4, fixed_abs, tag = 'smem constant byte address 0x4 - core index']
  #allocation1 [shape = 'u32[144,128]{1,0:T(1,128)}', space=vmem, size = 0x12000, scoped, tag = 'internal scratch']
  #allocation2 [shape = 'f32[16,128]{1,0:T(8,128)}', space=vmem, size = 0x2000, scoped, tag = 'scratch operand']
  %s0 = inlined_call_operand.hbm [shape: f32[2,8,128], index: 0, kind: input, shape index: {}]
  %s1 = inlined_call_operand.vmem [shape: f32[1,128], index: 1, kind: input, shape index: {}]
  %s2 = inlined_call_operand.vmem [shape: f32[1,128], index: 2, kind: input, shape index: {}]
  %s3 = inlined_call_operand.hbm [shape: bf16[128,384], index: 3, kind: input, shape index: {}]
  %s4 = inlined_call_operand.hbm [shape: bf16[128,128], index: 4, kind: input, shape index: {}]
  %s5 = inlined_call_operand.vmem [shape: f32[1,128], index: 5, kind: input, shape index: {}]
  %s6 = inlined_call_operand.vmem [shape: f32[1,128], index: 6, kind: input, shape index: {}]
  %s7 = inlined_call_operand.hbm [shape: f32[2,8,128], index: 7, kind: output, shape index: {}]
  %s8 = sld [smem:[#allocation0]]
  $region50: #{tpu_custom_call.1} parent=0
    _
  %s10 = ssub.s32 1, %s8
  %s11 = scalar_select 0, %s10, %s8
  $region1: #{tpu_custom_call.1} parent=0
    #allocation3 [shape = 'u8[8192]{0}', space=vmem, size = 0x2000, scoped, tag = 'input window, operand 0, single buffered']
    #allocation4 [shape = 's32[1]{0}', space=sflag, size = 0x4, scoped, tag = 'scoped memory for tpu_custom_call.1']
    #allocation5 [shape = 's32[1]{0}', space=sflag, size = 0x4, scoped, tag = 'scoped memory for tpu_custom_call.1']
    #allocation6 [shape = 'u8[98304]{0}', space=vmem, size = 0x18000, scoped, tag = 'input window, operand 3, single buffered']
    #allocation7 [shape = 's32[1]{0}', space=sflag, size = 0x4, scoped, tag = 'scoped memory for tpu_custom_call.1']
    #allocation8 [shape = 'u8[32768]{0}', space=vmem, size = 0x8000, scoped, tag = 'input window, operand 4, single buffered']
    #allocation9 [shape = 'u8[8192]{0}', space=vmem, size = 0x2000, scoped, tag = 'output window, operand 0, single buffered']
    %12 = vsyncpa [#allocation4], 0
    %13 = vsyncpa [#allocation7], 0
    %14 = vsyncpa [#allocation5], 0
    // Predicated region
    $region2: #{tpu_custom_call.1} parent=1 // pred_check
      _
    $region3: #{tpu_custom_call.1} parent=1 // pred_check_branch
      %16 = sbr.rel (0) target = $region5
    $region4: #{tpu_custom_call.1} parent=1 // pred_region
      %s18 = ssub.s32 256, 256
      %19 = vsyncadd [#allocation4], %s18
      %s20 = sshll.u32 [#allocation3], 4
      %s21 = int_to_ptr.vmem [resolvable:$true] %s20
      %26 = dma.hbm_to_vmem [thread:$0]  %s0, 256, %s21, [#allocation4], 128, 128, 8
    $region5: #{tpu_custom_call.1} parent=1 // pred_fallthru
      _
    // Predicated region
    $region6: #{tpu_custom_call.1} parent=1 // pred_check
      _
    $region7: #{tpu_custom_call.1} parent=1 // pred_check_branch
      %28 = sbr.rel (0) target = $region9
    $region8: #{tpu_custom_call.1} parent=1 // pred_region
      _
    $region9: #{tpu_custom_call.1} parent=1 // pred_fallthru
      _
    // Predicated region
    $region10: #{tpu_custom_call.1} parent=1 // pred_check
      _
    $region11: #{tpu_custom_call.1} parent=1 // pred_check_branch
      %30 = sbr.rel (0) target = $region13
    $region12: #{tpu_custom_call.1} parent=1 // pred_region
      _
    $region13: #{tpu_custom_call.1} parent=1 // pred_fallthru
      _
    // Predicated region
    $region14: #{tpu_custom_call.1} parent=1 // pred_check
      _
    $region15: #{tpu_custom_call.1} parent=1 // pred_check_branch
      %32 = sbr.rel (0) target = $region17
    $region16: #{tpu_custom_call.1} parent=1 // pred_region
      %s34 = ssub.s32 3072, 3072
      %35 = vsyncadd [#allocation7], %s34
      %s36 = sshll.u32 [#allocation6], 4
      %s37 = int_to_ptr.vmem [resolvable:$true] %s36
      %42 = dma.hbm_to_vmem [thread:$0]  %s3, 3072, %s37, [#allocation7], 192, 192, 12
    $region17: #{tpu_custom_call.1} parent=1 // pred_fallthru
      _
    // Predicated region
    $region18: #{tpu_custom_call.1} parent=1 // pred_check
      _
    $region19: #{tpu_custom_call.1} parent=1 // pred_check_branch
      %44 = sbr.rel (0) target = $region21
    $region20: #{tpu_custom_call.1} parent=1 // pred_region
      %s46 = ssub.s32 1024, 1024
      %47 = vsyncadd [#allocation7], %s46
      %s48 = sshll.u32 [#allocation8], 4
      %s49 = int_to_ptr.vmem [resolvable:$true] %s48
      %54 = dma.hbm_to_vmem [thread:$0]  %s4, 1024, %s49, [#allocation7], 64, 64, 4
    $region21: #{tpu_custom_call.1} parent=1 // pred_fallthru
      _
    // Predicated region
    $region22: #{tpu_custom_call.1} parent=1 // pred_check
      _
    $region23: #{tpu_custom_call.1} parent=1 // pred_check_branch
      %56 = sbr.rel (0) target = $region25
    $region24: #{tpu_custom_call.1} parent=1 // pred_region
      _
    $region25: #{tpu_custom_call.1} parent=1 // pred_fallthru
      _
    // Predicated region
    $region26: #{tpu_custom_call.1} parent=1 // pred_check
      _
    $region27: #{tpu_custom_call.1} parent=1 // pred_check_branch
      %58 = sbr.rel (0) target = $region29
    $region28: #{tpu_custom_call.1} parent=1 // pred_region
      _
    $region29: #{tpu_custom_call.1} parent=1 // pred_fallthru
      _
    // Predicated region
    $region30: #{tpu_custom_call.1} parent=1 // pred_check
      _
    $region31: #{tpu_custom_call.1} parent=1 // pred_check_branch
      %60 = sbr.rel (0) target = $region33
    $region32: #{tpu_custom_call.1} parent=1 // pred_region
      %61 = dma.done [#allocation4], 256
    $region33: #{tpu_custom_call.1} parent=1 // pred_fallthru
      _
    // Predicated region
    $region34: #{tpu_custom_call.1} parent=1 // pred_check
      _
    $region35: #{tpu_custom_call.1} parent=1 // pred_check_branch
      %63 = sbr.rel (0) target = $region37
    $region36: #{tpu_custom_call.1} parent=1 // pred_region
      %64 = dma.done [#allocation7], 3072
    $region37: #{tpu_custom_call.1} parent=1 // pred_fallthru
      _
    // Predicated region
    $region38: #{tpu_custom_call.1} parent=1 // pred_check
      _
    $region39: #{tpu_custom_call.1} parent=1 // pred_check_branch
      %66 = sbr.rel (0) target = $region41
    $region40: #{tpu_custom_call.1} parent=1 // pred_region
      %67 = dma.done [#allocation7], 1024
    $region41: #{tpu_custom_call.1} parent=1 // pred_fallthru
      _
    %v69 = vld [vmem:[#allocation3] sm:$0xff]
    %v70 = vld [vmem:[#allocation3 + $0x8] sm:$0xff]
    %71 = vadd.xlane.f32.xlu0 %v69
    %v72 = vpop.xlane.xlu0 %71
    %73 = vadd.xlane.f32.xlu0 %v70
    %v74 = vpop.xlane.xlu0 %73
    %v75 = vrcp.pop 128.0
    %v76 = vmul.f32 %v72, %v75
    %v77 = vmul.f32 %v74, %v75
    %v78 = vsub.f32 %v69, %v76
    %v79 = vsub.f32 %v70, %v77
    %v80 = vmul.f32 %v78, %v78
    %v81 = vmul.f32 %v79, %v79
    %82 = vadd.xlane.f32.xlu0 %v80
    %v83 = vpop.xlane.xlu0 %82
    %84 = vadd.xlane.f32.xlu0 %v81
    %v85 = vpop.xlane.xlu0 %84
    %v86 = vmul.f32 %v83, %v75
    %v87 = vmul.f32 %v85, %v75
    %v88 = vadd.f32 %v86, 1e-05
    %v89 = vadd.f32 %v87, 1e-05
    %v90 = vrsqrt.pop %v88
    %v91 = vrsqrt.pop %v89
    %v92 = vmul.f32 %v78, %v90
    %v93 = vmul.f32 %v79, %v91
    %v94 = vld [vmem:[%s1] sm:$0x1]
    %v96 = vlaneseq
    %v97 = vshrl.u32 %v96, 7
    %v98 = vsub.s32 0, %v97
    %v99 = vrot.slane %v94, %v98
    %v101 = vmul.f32 %v92, %v99
    %v102 = vmul.f32 %v93, %v99
    %v103 = vld [vmem:[%s2] sm:$0x1]
    %v105 = vlaneseq
    %v106 = vshrl.u32 %v105, 7
    %v107 = vsub.s32 0, %v106
    %v108 = vrot.slane %v103, %v107
    %v110 = vadd.f32 %v101, %v108
    %v111 = vadd.f32 %v102, %v108
    %v112 = vpack.c.bf16 %v111, %v110
    %v113 = vld [vmem:[#allocation6] sm:$0xff]
    %v114 = vld [vmem:[#allocation6 + $0x8] sm:$0xf]
    %v115 = vld [vmem:[#allocation6 + $0xc] sm:$0xff]
    %v116 = vld [vmem:[#allocation6 + $0x14] sm:$0xf]
    %v117 = vld [vmem:[#allocation6 + $0x18] sm:$0xff]
    %v118 = vld [vmem:[#allocation6 + $0x20] sm:$0xf]
    %v119 = vld [vmem:[#allocation6 + $0x24] sm:$0xff]
    %v120 = vld [vmem:[#allocation6 + $0x2c] sm:$0xf]
    %v121 = vld [vmem:[#allocation6 + $0x30] sm:$0xff]
    %v122 = vld [vmem:[#allocation6 + $0x38] sm:$0xf]
    %v123 = vld [vmem:[#allocation6 + $0x3c] sm:$0xff]
    %v124 = vld [vmem:[#allocation6 + $0x44] sm:$0xf]
    %v125 = vld [vmem:[#allocation6 + $0x48] sm:$0xff]
    %v126 = vld [vmem:[#allocation6 + $0x50] sm:$0xf]
    %v127 = vld [vmem:[#allocation6 + $0x54] sm:$0xff]
    %v128 = vld [vmem:[#allocation6 + $0x5c] sm:$0xf]
    %v129 = vld [vmem:[#allocation6 + $0x60] sm:$0xff]
    %v130 = vld [vmem:[#allocation6 + $0x68] sm:$0xf]
    %v131 = vld [vmem:[#allocation6 + $0x6c] sm:$0xff]
    %v132 = vld [vmem:[#allocation6 + $0x74] sm:$0xf]
    %v133 = vld [vmem:[#allocation6 + $0x78] sm:$0xff]
    %v134 = vld [vmem:[#allocation6 + $0x80] sm:$0xf]
    %v135 = vld [vmem:[#allocation6 + $0x84] sm:$0xff]
    %v136 = vld [vmem:[#allocation6 + $0x8c] sm:$0xf]
    %v137 = vld [vmem:[#allocation6 + $0x90] sm:$0xff]
    %v138 = vld [vmem:[#allocation6 + $0x98] sm:$0xf]
    %v139 = vld [vmem:[#allocation6 + $0x9c] sm:$0xff]
    %v140 = vld [vmem:[#allocation6 + $0xa4] sm:$0xf]
    %v141 = vld [vmem:[#allocation6 + $0xa8] sm:$0xff]
    %v142 = vld [vmem:[#allocation6 + $0xb0] sm:$0xf]
    %v143 = vld [vmem:[#allocation6 + $0xb4] sm:$0xff]
    %v144 = vld [vmem:[#allocation6 + $0xbc] sm:$0xf]
    %v177 = vunpack.c.l.b16 %v113
    %v178 = vunpack.c.h.b16 %v113
    %v179 = vunpack.c.l.b16 %v114
    %v180 = vunpack.c.l.b16 %v115
    %v181 = vunpack.c.h.b16 %v115
    %v182 = vunpack.c.l.b16 %v116
    %v183 = vunpack.c.l.b16 %v117
    %v184 = vunpack.c.h.b16 %v117
    %v185 = vunpack.c.l.b16 %v118
    %v186 = vunpack.c.l.b16 %v119
    %v187 = vunpack.c.h.b16 %v119
    %v188 = vunpack.c.l.b16 %v120
    %v189 = vunpack.c.l.b16 %v121
    %v190 = vunpack.c.h.b16 %v121
    %v191 = vunpack.c.l.b16 %v122
    %v192 = vunpack.c.l.b16 %v123
    %v193 = vunpack.c.h.b16 %v123
    %v194 = vunpack.c.l.b16 %v124
    %v195 = vunpack.c.l.b16 %v125
    %v196 = vunpack.c.h.b16 %v125
    %v197 = vunpack.c.l.b16 %v126
    %v198 = vunpack.c.l.b16 %v127
    %v199 = vunpack.c.h.b16 %v127
    %v200 = vunpack.c.l.b16 %v128
    %v201 = vunpack.c.l.b16 %v129
    %v202 = vunpack.c.h.b16 %v129
    %v203 = vunpack.c.l.b16 %v130
    %v204 = vunpack.c.l.b16 %v131
    %v205 = vunpack.c.h.b16 %v131
    %v206 = vunpack.c.l.b16 %v132
    %v207 = vunpack.c.l.b16 %v133
    %v208 = vunpack.c.h.b16 %v133
    %v209 = vunpack.c.l.b16 %v134
    %v210 = vunpack.c.l.b16 %v135
    %v211 = vunpack.c.h.b16 %v135
    %v212 = vunpack.c.l.b16 %v136
    %v213 = vunpack.c.l.b16 %v137
    %v214 = vunpack.c.h.b16 %v137
    %v215 = vunpack.c.l.b16 %v138
    %v216 = vunpack.c.l.b16 %v139
    %v217 = vunpack.c.h.b16 %v139
    %v218 = vunpack.c.l.b16 %v140
    %v219 = vunpack.c.l.b16 %v141
    %v220 = vunpack.c.h.b16 %v141
    %v221 = vunpack.c.l.b16 %v142
    %v222 = vunpack.c.l.b16 %v143
    %v223 = vunpack.c.h.b16 %v143
    %v224 = vunpack.c.l.b16 %v144
    %v225 = vpack.c.b16 %v180, %v177
    %v226 = vpack.c.b16 %v181, %v178
    %v227 = vpack.c.b16 %v182, %v179
    %v228 = vpack.c.b16 %v186, %v183
    %v229 = vpack.c.b16 %v187, %v184
    %v230 = vpack.c.b16 %v188, %v185
    %v231 = vpack.c.b16 %v192, %v189
    %v232 = vpack.c.b16 %v193, %v190
    %v233 = vpack.c.b16 %v194, %v191
    %v234 = vpack.c.b16 %v198, %v195
    %v235 = vpack.c.b16 %v199, %v196
    %v236 = vpack.c.b16 %v200, %v197
    %v237 = vpack.c.b16 %v204, %v201
    %v238 = vpack.c.b16 %v205, %v202
    %v239 = vpack.c.b16 %v206, %v203
    %v240 = vpack.c.b16 %v210, %v207
    %v241 = vpack.c.b16 %v211, %v208
    %v242 = vpack.c.b16 %v212, %v209
    %v243 = vpack.c.b16 %v216, %v213
    %v244 = vpack.c.b16 %v217, %v214
    %v245 = vpack.c.b16 %v218, %v215
    %v246 = vpack.c.b16 %v222, %v219
    %v247 = vpack.c.b16 %v223, %v220
    %v248 = vpack.c.b16 %v224, %v221
    %273 = vmatprep.subr.bf16.mxu0 %v226
    %274 = vmatpush1.bf16.msra.mxu0 %v225
    %275 = vmatprep.subr.bf16.mxu0 %v229
    %276 = vmatpush1.bf16.msra.mxu0 %v228
    %277 = vmatprep.subr.bf16.mxu0 %v232
    %278 = vmatpush1.bf16.msra.mxu0 %v231
    %279 = vmatprep.subr.bf16.mxu0 %v235
    %280 = vmatpush1.bf16.msra.mxu0 %v234
    %281 = vmatprep.subr.bf16.mxu0 %v238
    %282 = vmatpush1.bf16.msra.mxu0 %v237
    %283 = vmatprep.subr.bf16.mxu0 %v241
    %284 = vmatpush1.bf16.msra.mxu0 %v240
    %285 = vmatprep.subr.bf16.mxu0 %v244
    %286 = vmatpush1.bf16.msra.mxu0 %v243
    %287 = vmatprep.subr.bf16.mxu0 %v247
    %288 = vmatpush1.bf16.msra.mxu0 %v246
    %289 = vmatprep.subr.bf16.mxu0 0
    %290 = vmatpush1.bf16.msra.mxu0 0
    %291 = vmatprep.subr.bf16.mxu0 0
    %292 = vmatpush1.bf16.msra.mxu0 0
    %293 = vmatprep.subr.bf16.mxu0 0
    %294 = vmatpush1.bf16.msra.mxu0 0
    %295 = vmatprep.subr.bf16.mxu0 0
    %296 = vmatpush1.bf16.msra.mxu0 0
    %297 = vmatprep.subr.bf16.mxu0 0
    %298 = vmatpush1.bf16.msra.mxu0 0
    %299 = vmatprep.subr.bf16.mxu0 0
    %300 = vmatpush1.bf16.msra.mxu0 0
    %301 = vmatprep.subr.bf16.mxu0 0
    %302 = vmatpush1.bf16.msra.mxu0 0
    %303 = vmatprep.subr.bf16.mxu0 0
    %304 = vmatpush1.bf16.msra.mxu0 0
    %305 = vmatprep.mubr.bf16.mxu0 0
    %306 = vmatmul.mubr.bf16.gmra.mrb[0].mxu0 %v112
    %v307 = vpop.f32.mrb[0].mxu0
    %v308 = vadd.f32 0.0, %v307
    %v309 = vpop.f32.mrb[0].mxu0
    %v310 = vadd.f32 0.0, %v309
    %v311 = vpop.f32.mrb[0].mxu0
    %v312 = vadd.f32 0.0, %v311
    %v313 = vpop.f32.mrb[0].mxu0
    %v314 = vadd.f32 0.0, %v313
    %315 = vdwg.mxu0
    %316 = vmatprep.subr.bf16.mxu0 0
    %317 = vmatpush1.bf16.msra.mxu0 %v227
    %318 = vmatprep.subr.bf16.mxu0 0
    %319 = vmatpush1.bf16.msra.mxu0 %v230
    %320 = vmatprep.subr.bf16.mxu0 0
    %321 = vmatpush1.bf16.msra.mxu0 %v233
    %322 = vmatprep.subr.bf16.mxu0 0
    %323 = vmatpush1.bf16.msra.mxu0 %v236
    %324 = vmatprep.subr.bf16.mxu0 0
    %325 = vmatpush1.bf16.msra.mxu0 %v239
    %326 = vmatprep.subr.bf16.mxu0 0
    %327 = vmatpush1.bf16.msra.mxu0 %v242
    %328 = vmatprep.subr.bf16.mxu0 0
    %329 = vmatpush1.bf16.msra.mxu0 %v245
    %330 = vmatprep.subr.bf16.mxu0 0
    %331 = vmatpush1.bf16.msra.mxu0 %v248
    %332 = vmatprep.subr.bf16.mxu0 0
    %333 = vmatpush1.bf16.msra.mxu0 0
    %334 = vmatprep.subr.bf16.mxu0 0
    %335 = vmatpush1.bf16.msra.mxu0 0
    %336 = vmatprep.subr.bf16.mxu0 0
    %337 = vmatpush1.bf16.msra.mxu0 0
    %338 = vmatprep.subr.bf16.mxu0 0
    %339 = vmatpush1.bf16.msra.mxu0 0
    %340 = vmatprep.subr.bf16.mxu0 0
    %341 = vmatpush1.bf16.msra.mxu0 0
    %342 = vmatprep.subr.bf16.mxu0 0
    %343 = vmatpush1.bf16.msra.mxu0 0
    %344 = vmatprep.subr.bf16.mxu0 0
    %345 = vmatpush1.bf16.msra.mxu0 0
    %346 = vmatprep.subr.bf16.mxu0 0
    %347 = vmatpush1.bf16.msra.mxu0 0
    %348 = vmatprep.mubr.bf16.mxu0 0
    %349 = vmatmul.mubr.bf16.gmra.mrb[0].mxu0 %v112
    %v350 = vpop.f32.mrb[0].mxu0
    %v351 = vadd.f32 0.0, %v350
    %v352 = vpop.f32.mrb[0].mxu0
    %v353 = vpop.f32.mrb[0].mxu0
    %v354 = vadd.f32 0.0, %v353
    %v355 = vpop.f32.mrb[0].mxu0
    %356 = vdwg.mxu0
    %v357 = vmul.f32 %v308, 0.125
    %v358 = vmul.f32 %v312, 0.125
    %v359 = vpack.c.bf16 %v358, %v357
    %v360 = vpack.c.bf16 %v314, %v310
    %v361 = vpack.c.bf16 %v354, %v351
    %vm362 = vcmask 523264
    %v364 = vsel %vm362, %v359, 0
    %v367 = vsel %vm362, %v360, 0
    %369 = vmatprep.subr.bf16.mxu0 0
    %370 = vmatpush1.bf16.xpose.msra.mxu0 %v367
    %371 = vmatprep.subr.bf16.mxu0 0
    %372 = vmatpush1.bf16.xpose.msra.mxu0 0
    %373 = vmatprep.subr.bf16.mxu0 0
    %374 = vmatpush1.bf16.xpose.msra.mxu0 0
    %375 = vmatprep.subr.bf16.mxu0 0
    %376 = vmatpush1.bf16.xpose.msra.mxu0 0
    %377 = vmatprep.subr.bf16.mxu0 0
    %378 = vmatpush1.bf16.xpose.msra.mxu0 0
    %379 = vmatprep.subr.bf16.mxu0 0
    %380 = vmatpush1.bf16.xpose.msra.mxu0 0
    %381 = vmatprep.subr.bf16.mxu0 0
    %382 = vmatpush1.bf16.xpose.msra.mxu0 0
    %383 = vmatprep.subr.bf16.mxu0 0
    %384 = vmatpush1.bf16.xpose.msra.mxu0 0
    %385 = vmatprep.subr.bf16.mxu0 0
    %386 = vmatpush1.bf16.xpose.msra.mxu0 0
    %387 = vmatprep.subr.bf16.mxu0 0
    %388 = vmatpush1.bf16.xpose.msra.mxu0 0
    %389 = vmatprep.subr.bf16.mxu0 0
    %390 = vmatpush1.bf16.xpose.msra.mxu0 0
    %391 = vmatprep.subr.bf16.mxu0 0
    %392 = vmatpush1.bf16.xpose.msra.mxu0 0
    %393 = vmatprep.subr.bf16.mxu0 0
    %394 = vmatpush1.bf16.xpose.msra.mxu0 0
    %395 = vmatprep.subr.bf16.mxu0 0
    %396 = vmatpush1.bf16.xpose.msra.mxu0 0
    %397 = vmatprep.subr.bf16.mxu0 0
    %398 = vmatpush1.bf16.xpose.msra.mxu0 0
    %399 = vmatprep.subr.bf16.mxu0 0
    %400 = vmatpush1.bf16.xpose.msra.mxu0 0
    %401 = vmatprep.mubr.bf16.mxu0 0
    %402 = vmatmul.mubr.bf16.gmra.mrb[0].mxu0 %v364
    %v403 = vpop.f32.mrb[0].mxu0
    %v404 = vadd.f32 0.0, %v403
    %v405 = vpop.f32.mrb[0].mxu0
    %v406 = vpop.f32.mrb[0].mxu0
    %v407 = vpop.f32.mrb[0].mxu0
    %408 = vdwg.mxu0
    %vm409 = vcmask 64512
    %v410 = vsel %vm409, %v404, -inf
    %411 = vmax.xlane.f32.xlu0 %v410
    %v412 = vpop.xlane.xlu0 %411
    %v413 = vsub.f32 %v404, %v412
    %v414 = vmul.f32 %v413, 1.442695
    %v415 = vpow.pop %v414
    %v416 = vsel %vm409, %v415, 0.0
    %417 = vadd.xlane.f32.xlu0 %v416
    %v418 = vpop.xlane.xlu0 %417
    %v419 = vrcp.pop %v418
    %v420 = vmul.f32 %v415, %v419
    %v421 = vpack.c.bf16 %v420, %v420
    %v423 = vsel %vm409, %v421, 0
    %vm425 = vcmask 1043456
    %v427 = vsel %vm425, %v361, 0
    %429 = vmatprep.subr.bf16.mxu0 0
    %430 = vmatpush1.bf16.msra.mxu0 %v427
    %431 = vmatprep.subr.bf16.mxu0 0
    %432 = vmatpush1.bf16.msra.mxu0 0
    %433 = vmatprep.subr.bf16.mxu0 0
    %434 = vmatpush1.bf16.msra.mxu0 0
    %435 = vmatprep.subr.bf16.mxu0 0
    %436 = vmatpush1.bf16.msra.mxu0 0
    %437 = vmatprep.subr.bf16.mxu0 0
    %438 = vmatpush1.bf16.msra.mxu0 0
    %439 = vmatprep.subr.bf16.mxu0 0
    %440 = vmatpush1.bf16.msra.mxu0 0
    %441 = vmatprep.subr.bf16.mxu0 0
    %442 = vmatpush1.bf16.msra.mxu0 0
    %443 = vmatprep.subr.bf16.mxu0 0
    %444 = vmatpush1.bf16.msra.mxu0 0
    %445 = vmatprep.subr.bf16.mxu0 0
    %446 = vmatpush1.bf16.msra.mxu0 0
    %447 = vmatprep.subr.bf16.mxu0 0
    %448 = vmatpush1.bf16.msra.mxu0 0
    %449 = vmatprep.subr.bf16.mxu0 0
    %450 = vmatpush1.bf16.msra.mxu0 0
    %451 = vmatprep.subr.bf16.mxu0 0
    %452 = vmatpush1.bf16.msra.mxu0 0
    %453 = vmatprep.subr.bf16.mxu0 0
    %454 = vmatpush1.bf16.msra.mxu0 0
    %455 = vmatprep.subr.bf16.mxu0 0
    %456 = vmatpush1.bf16.msra.mxu0 0
    %457 = vmatprep.subr.bf16.mxu0 0
    %458 = vmatpush1.bf16.msra.mxu0 0
    %459 = vmatprep.subr.bf16.mxu0 0
    %460 = vmatpush1.bf16.msra.mxu0 0
    %461 = vmatprep.mubr.bf16.mxu0 0
    %462 = vmatmul.mubr.bf16.gmra.mrb[0].mxu0 %v423
    %v463 = vpop.f32.mrb[0].mxu0
    %v464 = vadd.f32 0.0, %v463
    %v465 = vpop.f32.mrb[0].mxu0
    %v466 = vpop.f32.mrb[0].mxu0
    %v467 = vpop.f32.mrb[0].mxu0
    %468 = vdwg.mxu0
    %469 = vst.msk [vmem:[#allocation2] sm:$0xff] %vm362, %v464
    %471 = vrot.lane.b32.xlu0 %v359, 64
    %v472 = vpop.permute.xlu0 %471
    %474 = vrot.lane.b32.xlu0 %v360, 64
    %v475 = vpop.permute.xlu0 %474
    %v477 = vsel %vm362, %v472, 0
    %v480 = vsel %vm362, %v475, 0
    %482 = vmatprep.subr.bf16.mxu0 0
    %483 = vmatpush1.bf16.xpose.msra.mxu0 %v480
    %484 = vmatprep.subr.bf16.mxu0 0
    %485 = vmatpush1.bf16.xpose.msra.mxu0 0
    %486 = vmatprep.subr.bf16.mxu0 0
    %487 = vmatpush1.bf16.xpose.msra.mxu0 0
    %488 = vmatprep.subr.bf16.mxu0 0
    %489 = vmatpush1.bf16.xpose.msra.mxu0 0
    %490 = vmatprep.subr.bf16.mxu0 0
    %491 = vmatpush1.bf16.xpose.msra.mxu0 0
    %492 = vmatprep.subr.bf16.mxu0 0
    %493 = vmatpush1.bf16.xpose.msra.mxu0 0
    %494 = vmatprep.subr.bf16.mxu0 0
    %495 = vmatpush1.bf16.xpose.msra.mxu0 0
    %496 = vmatprep.subr.bf16.mxu0 0
    %497 = vmatpush1.bf16.xpose.msra.mxu0 0
    %498 = vmatprep.subr.bf16.mxu0 0
    %499 = vmatpush1.bf16.xpose.msra.mxu0 0
    %500 = vmatprep.subr.bf16.mxu0 0
    %501 = vmatpush1.bf16.xpose.msra.mxu0 0
    %502 = vmatprep.subr.bf16.mxu0 0
    %503 = vmatpush1.bf16.xpose.msra.mxu0 0
    %504 = vmatprep.subr.bf16.mxu0 0
    %505 = vmatpush1.bf16.xpose.msra.mxu0 0
    %506 = vmatprep.subr.bf16.mxu0 0
    %507 = vmatpush1.bf16.xpose.msra.mxu0 0
    %508 = vmatprep.subr.bf16.mxu0 0
    %509 = vmatpush1.bf16.xpose.msra.mxu0 0
    %510 = vmatprep.subr.bf16.mxu0 0
    %511 = vmatpush1.bf16.xpose.msra.mxu0 0
    %512 = vmatprep.subr.bf16.mxu0 0
    %513 = vmatpush1.bf16.xpose.msra.mxu0 0
    %514 = vmatprep.mubr.bf16.mxu0 0
    %515 = vmatmul.mubr.bf16.gmra.mrb[0].mxu0 %v477
    %v516 = vpop.f32.mrb[0].mxu0
    %v517 = vadd.f32 0.0, %v516
    %v518 = vpop.f32.mrb[0].mxu0
    %v519 = vpop.f32.mrb[0].mxu0
    %v520 = vpop.f32.mrb[0].mxu0
    %521 = vdwg.mxu0
    %v522 = vsel %vm409, %v517, -inf
    %523 = vmax.xlane.f32.xlu0 %v522
    %v524 = vpop.xlane.xlu0 %523
    %v525 = vsub.f32 %v517, %v524
    %v526 = vmul.f32 %v525, 1.442695
    %v527 = vpow.pop %v526
    %v528 = vsel %vm409, %v527, 0.0
    %529 = vadd.xlane.f32.xlu0 %v528
    %v530 = vpop.xlane.xlu0 %529
    %v531 = vrcp.pop %v530
    %v532 = vmul.f32 %v527, %v531
    %v533 = vpack.c.bf16 %v532, %v532
    %535 = vrot.lane.b32.xlu0 %v361, 64
    %v536 = vpop.permute.xlu0 %535
    %v538 = vsel %vm409, %v533, 0
    %v541 = vsel %vm425, %v536, 0
    %543 = vmatprep.subr.bf16.mxu0 0
    %544 = vmatpush1.bf16.msra.mxu0 %v541
    %545 = vmatprep.subr.bf16.mxu0 0
    %546 = vmatpush1.bf16.msra.mxu0 0
    %547 = vmatprep.subr.bf16.mxu0 0
    %548 = vmatpush1.bf16.msra.mxu0 0
    %549 = vmatprep.subr.bf16.mxu0 0
    %550 = vmatpush1.bf16.msra.mxu0 0
    %551 = vmatprep.subr.bf16.mxu0 0
    %552 = vmatpush1.bf16.msra.mxu0 0
    %553 = vmatprep.subr.bf16.mxu0 0
    %554 = vmatpush1.bf16.msra.mxu0 0
    %555 = vmatprep.subr.bf16.mxu0 0
    %556 = vmatpush1.bf16.msra.mxu0 0
    %557 = vmatprep.subr.bf16.mxu0 0
    %558 = vmatpush1.bf16.msra.mxu0 0
    %559 = vmatprep.subr.bf16.mxu0 0
    %560 = vmatpush1.bf16.msra.mxu0 0
    %561 = vmatprep.subr.bf16.mxu0 0
    %562 = vmatpush1.bf16.msra.mxu0 0
    %563 = vmatprep.subr.bf16.mxu0 0
    %564 = vmatpush1.bf16.msra.mxu0 0
    %565 = vmatprep.subr.bf16.mxu0 0
    %566 = vmatpush1.bf16.msra.mxu0 0
    %567 = vmatprep.subr.bf16.mxu0 0
    %568 = vmatpush1.bf16.msra.mxu0 0
    %569 = vmatprep.subr.bf16.mxu0 0
    %570 = vmatpush1.bf16.msra.mxu0 0
    %571 = vmatprep.subr.bf16.mxu0 0
    %572 = vmatpush1.bf16.msra.mxu0 0
    %573 = vmatprep.subr.bf16.mxu0 0
    %574 = vmatpush1.bf16.msra.mxu0 0
    %575 = vmatprep.mubr.bf16.mxu0 0
    %576 = vmatmul.mubr.bf16.gmra.mrb[0].mxu0 %v538
    %v577 = vpop.f32.mrb[0].mxu0
    %v578 = vadd.f32 0.0, %v577
    %v579 = vpop.f32.mrb[0].mxu0
    %v580 = vpop.f32.mrb[0].mxu0
    %v581 = vpop.f32.mrb[0].mxu0
    %582 = vdwg.mxu0
    %584 = vrot.lane.b32.xlu0 %v578, 64
    %v585 = vpop.permute.xlu0 %584
    %vm587 = vcmask 1048064
    %588 = vst.msk [vmem:[#allocation2] sm:$0xff] %vm587, %v585
    %v589 = vrot.slane %v359, 4
    %v590 = vrot.slane %v360, 4
    %v592 = vsel %vm362, %v589, 0
    %v595 = vsel %vm362, %v590, 0
    %597 = vmatprep.subr.bf16.mxu0 0
    %598 = vmatpush1.bf16.xpose.msra.mxu0 %v595
    %599 = vmatprep.subr.bf16.mxu0 0
    %600 = vmatpush1.bf16.xpose.msra.mxu0 0
    %601 = vmatprep.subr.bf16.mxu0 0
    %602 = vmatpush1.bf16.xpose.msra.mxu0 0
    %603 = vmatprep.subr.bf16.mxu0 0
    %604 = vmatpush1.bf16.xpose.msra.mxu0 0
    %605 = vmatprep.subr.bf16.mxu0 0
    %606 = vmatpush1.bf16.xpose.msra.mxu0 0
    %607 = vmatprep.subr.bf16.mxu0 0
    %608 = vmatpush1.bf16.xpose.msra.mxu0 0
    %609 = vmatprep.subr.bf16.mxu0 0
    %610 = vmatpush1.bf16.xpose.msra.mxu0 0
    %611 = vmatprep.subr.bf16.mxu0 0
    %612 = vmatpush1.bf16.xpose.msra.mxu0 0
    %613 = vmatprep.subr.bf16.mxu0 0
    %614 = vmatpush1.bf16.xpose.msra.mxu0 0
    %615 = vmatprep.subr.bf16.mxu0 0
    %616 = vmatpush1.bf16.xpose.msra.mxu0 0
    %617 = vmatprep.subr.bf16.mxu0 0
    %618 = vmatpush1.bf16.xpose.msra.mxu0 0
    %619 = vmatprep.subr.bf16.mxu0 0
    %620 = vmatpush1.bf16.xpose.msra.mxu0 0
    %621 = vmatprep.subr.bf16.mxu0 0
    %622 = vmatpush1.bf16.xpose.msra.mxu0 0
    %623 = vmatprep.subr.bf16.mxu0 0
    %624 = vmatpush1.bf16.xpose.msra.mxu0 0
    %625 = vmatprep.subr.bf16.mxu0 0
    %626 = vmatpush1.bf16.xpose.msra.mxu0 0
    %627 = vmatprep.subr.bf16.mxu0 0
    %628 = vmatpush1.bf16.xpose.msra.mxu0 0
    %629 = vmatprep.mubr.bf16.mxu0 0
    %630 = vmatmul.mubr.bf16.gmra.mrb[0].mxu0 %v592
    %v631 = vpop.f32.mrb[0].mxu0
    %v632 = vadd.f32 0.0, %v631
    %v633 = vpop.f32.mrb[0].mxu0
    %v634 = vpop.f32.mrb[0].mxu0
    %v635 = vpop.f32.mrb[0].mxu0
    %636 = vdwg.mxu0
    %v637 = vsel %vm409, %v632, -inf
    %638 = vmax.xlane.f32.xlu0 %v637
    %v639 = vpop.xlane.xlu0 %638
    %v640 = vsub.f32 %v632, %v639
    %v641 = vmul.f32 %v640, 1.442695
    %v642 = vpow.pop %v641
    %v643 = vsel %vm409, %v642, 0.0
    %644 = vadd.xlane.f32.xlu0 %v643
    %v645 = vpop.xlane.xlu0 %644
    %v646 = vrcp.pop %v645
    %v647 = vmul.f32 %v642, %v646
    %v648 = vpack.c.bf16 %v647, %v647
    %v649 = vrot.slane %v361, 4
    %v651 = vsel %vm409, %v648, 0
    %v654 = vsel %vm425, %v649, 0
    %656 = vmatprep.subr.bf16.mxu0 0
    %657 = vmatpush1.bf16.msra.mxu0 %v654
    %658 = vmatprep.subr.bf16.mxu0 0
    %659 = vmatpush1.bf16.msra.mxu0 0
    %660 = vmatprep.subr.bf16.mxu0 0
    %661 = vmatpush1.bf16.msra.mxu0 0
    %662 = vmatprep.subr.bf16.mxu0 0
    %663 = vmatpush1.bf16.msra.mxu0 0
    %664 = vmatprep.subr.bf16.mxu0 0
    %665 = vmatpush1.bf16.msra.mxu0 0
    %666 = vmatprep.subr.bf16.mxu0 0
    %667 = vmatpush1.bf16.msra.mxu0 0
    %668 = vmatprep.subr.bf16.mxu0 0
    %669 = vmatpush1.bf16.msra.mxu0 0
    %670 = vmatprep.subr.bf16.mxu0 0
    %671 = vmatpush1.bf16.msra.mxu0 0
    %672 = vmatprep.subr.bf16.mxu0 0
    %673 = vmatpush1.bf16.msra.mxu0 0
    %674 = vmatprep.subr.bf16.mxu0 0
    %675 = vmatpush1.bf16.msra.mxu0 0
    %676 = vmatprep.subr.bf16.mxu0 0
    %677 = vmatpush1.bf16.msra.mxu0 0
    %678 = vmatprep.subr.bf16.mxu0 0
    %679 = vmatpush1.bf16.msra.mxu0 0
    %680 = vmatprep.subr.bf16.mxu0 0
    %681 = vmatpush1.bf16.msra.mxu0 0
    %682 = vmatprep.subr.bf16.mxu0 0
    %683 = vmatpush1.bf16.msra.mxu0 0
    %684 = vmatprep.subr.bf16.mxu0 0
    %685 = vmatpush1.bf16.msra.mxu0 0
    %686 = vmatprep.subr.bf16.mxu0 0
    %687 = vmatpush1.bf16.msra.mxu0 0
    %688 = vmatprep.mubr.bf16.mxu0 0
    %689 = vmatmul.mubr.bf16.gmra.mrb[0].mxu0 %v651
    %v690 = vpop.f32.mrb[0].mxu0
    %v691 = vadd.f32 0.0, %v690
    %v692 = vpop.f32.mrb[0].mxu0
    %v693 = vpop.f32.mrb[0].mxu0
    %v694 = vpop.f32.mrb[0].mxu0
    %695 = vdwg.mxu0
    %696 = vst.msk [vmem:[#allocation2 + $0x8] sm:$0xff] %vm362, %v691
    %697 = vrot.lane.b32.xlu0 %v589, 64
    %v698 = vpop.permute.xlu0 %697
    %699 = vrot.lane.b32.xlu0 %v590, 64
    %v700 = vpop.permute.xlu0 %699
    %v702 = vsel %vm362, %v698, 0
    %v705 = vsel %vm362, %v700, 0
    %707 = vmatprep.subr.bf16.mxu0 0
    %708 = vmatpush1.bf16.xpose.msra.mxu0 %v705
    %709 = vmatprep.subr.bf16.mxu0 0
    %710 = vmatpush1.bf16.xpose.msra.mxu0 0
    %711 = vmatprep.subr.bf16.mxu0 0
    %712 = vmatpush1.bf16.xpose.msra.mxu0 0
    %713 = vmatprep.subr.bf16.mxu0 0
    %714 = vmatpush1.bf16.xpose.msra.mxu0 0
    %715 = vmatprep.subr.bf16.mxu0 0
    %716 = vmatpush1.bf16.xpose.msra.mxu0 0
    %717 = vmatprep.subr.bf16.mxu0 0
    %718 = vmatpush1.bf16.xpose.msra.mxu0 0
    %719 = vmatprep.subr.bf16.mxu0 0
    %720 = vmatpush1.bf16.xpose.msra.mxu0 0
    %721 = vmatprep.subr.bf16.mxu0 0
    %722 = vmatpush1.bf16.xpose.msra.mxu0 0
    %723 = vmatprep.subr.bf16.mxu0 0
    %724 = vmatpush1.bf16.xpose.msra.mxu0 0
    %725 = vmatprep.subr.bf16.mxu0 0
    %726 = vmatpush1.bf16.xpose.msra.mxu0 0
    %727 = vmatprep.subr.bf16.mxu0 0
    %728 = vmatpush1.bf16.xpose.msra.mxu0 0
    %729 = vmatprep.subr.bf16.mxu0 0
    %730 = vmatpush1.bf16.xpose.msra.mxu0 0
    %731 = vmatprep.subr.bf16.mxu0 0
    %732 = vmatpush1.bf16.xpose.msra.mxu0 0
    %733 = vmatprep.subr.bf16.mxu0 0
    %734 = vmatpush1.bf16.xpose.msra.mxu0 0
    %735 = vmatprep.subr.bf16.mxu0 0
    %736 = vmatpush1.bf16.xpose.msra.mxu0 0
    %737 = vmatprep.subr.bf16.mxu0 0
    %738 = vmatpush1.bf16.xpose.msra.mxu0 0
    %739 = vmatprep.mubr.bf16.mxu0 0
    %740 = vmatmul.mubr.bf16.gmra.mrb[0].mxu0 %v702
    %v741 = vpop.f32.mrb[0].mxu0
    %v742 = vadd.f32 0.0, %v741
    %v743 = vpop.f32.mrb[0].mxu0
    %v744 = vpop.f32.mrb[0].mxu0
    %v745 = vpop.f32.mrb[0].mxu0
    %746 = vdwg.mxu0
    %v747 = vsel %vm409, %v742, -inf
    %748 = vmax.xlane.f32.xlu0 %v747
    %v749 = vpop.xlane.xlu0 %748
    %v750 = vsub.f32 %v742, %v749
    %v751 = vmul.f32 %v750, 1.442695
    %v752 = vpow.pop %v751
    %v753 = vsel %vm409, %v752, 0.0
    %754 = vadd.xlane.f32.xlu0 %v753
    %v755 = vpop.xlane.xlu0 %754
    %v756 = vrcp.pop %v755
    %v757 = vmul.f32 %v752, %v756
    %v758 = vpack.c.bf16 %v757, %v757
    %759 = vrot.lane.b32.xlu0 %v649, 64
    %v760 = vpop.permute.xlu0 %759
    %v762 = vsel %vm409, %v758, 0
    %v765 = vsel %vm425, %v760, 0
    %767 = vmatprep.subr.bf16.mxu0 0
    %768 = vmatpush1.bf16.msra.mxu0 %v765
    %769 = vmatprep.subr.bf16.mxu0 0
    %770 = vmatpush1.bf16.msra.mxu0 0
    %771 = vmatprep.subr.bf16.mxu0 0
    %772 = vmatpush1.bf16.msra.mxu0 0
    %773 = vmatprep.subr.bf16.mxu0 0
    %774 = vmatpush1.bf16.msra.mxu0 0
    %775 = vmatprep.subr.bf16.mxu0 0
    %776 = vmatpush1.bf16.msra.mxu0 0
    %777 = vmatprep.subr.bf16.mxu0 0
    %778 = vmatpush1.bf16.msra.mxu0 0
    %779 = vmatprep.subr.bf16.mxu0 0
    %780 = vmatpush1.bf16.msra.mxu0 0
    %781 = vmatprep.subr.bf16.mxu0 0
    %782 = vmatpush1.bf16.msra.mxu0 0
    %783 = vmatprep.subr.bf16.mxu0 0
    %784 = vmatpush1.bf16.msra.mxu0 0
    %785 = vmatprep.subr.bf16.mxu0 0
    %786 = vmatpush1.bf16.msra.mxu0 0
    %787 = vmatprep.subr.bf16.mxu0 0
    %788 = vmatpush1.bf16.msra.mxu0 0
    %789 = vmatprep.subr.bf16.mxu0 0
    %790 = vmatpush1.bf16.msra.mxu0 0
    %791 = vmatprep.subr.bf16.mxu0 0
    %792 = vmatpush1.bf16.msra.mxu0 0
    %793 = vmatprep.subr.bf16.mxu0 0
    %794 = vmatpush1.bf16.msra.mxu0 0
    %795 = vmatprep.subr.bf16.mxu0 0
    %796 = vmatpush1.bf16.msra.mxu0 0
    %797 = vmatprep.subr.bf16.mxu0 0
    %798 = vmatpush1.bf16.msra.mxu0 0
    %799 = vmatprep.mubr.bf16.mxu0 0
    %800 = vmatmul.mubr.bf16.gmra.mrb[0].mxu0 %v762
    %v801 = vpop.f32.mrb[0].mxu0
    %v802 = vadd.f32 0.0, %v801
    %v803 = vpop.f32.mrb[0].mxu0
    %v804 = vpop.f32.mrb[0].mxu0
    %v805 = vpop.f32.mrb[0].mxu0
    %806 = vdwg.mxu0
    %808 = vrot.lane.b32.xlu0 %v802, 64
    %v809 = vpop.permute.xlu0 %808
    %811 = vst.msk [vmem:[#allocation2 + $0x8] sm:$0xff] %vm587, %v809
    %v812 = vld [vmem:[#allocation2] sm:$0xff]
    %v813 = vld [vmem:[#allocation2 + $0x8] sm:$0xff]
    %v814 = vpack.c.bf16 %v813, %v812
    %v815 = vld [vmem:[#allocation8] sm:$0xf]
    %v816 = vld [vmem:[#allocation8 + $0x4] sm:$0xf]
    %v817 = vld [vmem:[#allocation8 + $0x8] sm:$0xf]
    %v818 = vld [vmem:[#allocation8 + $0xc] sm:$0xf]
    %v819 = vld [vmem:[#allocation8 + $0x10] sm:$0xf]
    %v820 = vld [vmem:[#allocation8 + $0x14] sm:$0xf]
    %v821 = vld [vmem:[#allocation8 + $0x18] sm:$0xf]
    %v822 = vld [vmem:[#allocation8 + $0x1c] sm:$0xf]
    %v823 = vld [vmem:[#allocation8 + $0x20] sm:$0xf]
    %v824 = vld [vmem:[#allocation8 + $0x24] sm:$0xf]
    %v825 = vld [vmem:[#allocation8 + $0x28] sm:$0xf]
    %v826 = vld [vmem:[#allocation8 + $0x2c] sm:$0xf]
    %v827 = vld [vmem:[#allocation8 + $0x30] sm:$0xf]
    %v828 = vld [vmem:[#allocation8 + $0x34] sm:$0xf]
    %v829 = vld [vmem:[#allocation8 + $0x38] sm:$0xf]
    %v830 = vld [vmem:[#allocation8 + $0x3c] sm:$0xf]
    %v831 = vld [vmem:[%s5] sm:$0x1]
    %v833 = vlaneseq
    %v834 = vshrl.u32 %v833, 7
    %v835 = vsub.s32 0, %v834
    %v836 = vrot.slane %v831, %v835
    %v854 = vunpack.c.l.b16 %v815
    %v855 = vunpack.c.l.b16 %v816
    %v856 = vunpack.c.l.b16 %v817
    %v857 = vunpack.c.l.b16 %v818
    %v858 = vunpack.c.l.b16 %v819
    %v859 = vunpack.c.l.b16 %v820
    %v860 = vunpack.c.l.b16 %v821
    %v861 = vunpack.c.l.b16 %v822
    %v862 = vunpack.c.l.b16 %v823
    %v863 = vunpack.c.l.b16 %v824
    %v864 = vunpack.c.l.b16 %v825
    %v865 = vunpack.c.l.b16 %v826
    %v866 = vunpack.c.l.b16 %v827
    %v867 = vunpack.c.l.b16 %v828
    %v868 = vunpack.c.l.b16 %v829
    %v869 = vunpack.c.l.b16 %v830
    %v870 = vpack.c.b16 %v855, %v854
    %v871 = vpack.c.b16 %v857, %v856
    %v872 = vpack.c.b16 %v859, %v858
    %v873 = vpack.c.b16 %v861, %v860
    %v874 = vpack.c.b16 %v863, %v862
    %v875 = vpack.c.b16 %v865, %v864
    %v876 = vpack.c.b16 %v867, %v866
    %v877 = vpack.c.b16 %v869, %v868
    %886 = vmatprep.subr.bf16.mxu0 0
    %887 = vmatpush1.bf16.msra.mxu0 %v870
    %888 = vmatprep.subr.bf16.mxu0 0
    %889 = vmatpush1.bf16.msra.mxu0 %v871
    %890 = vmatprep.subr.bf16.mxu0 0
    %891 = vmatpush1.bf16.msra.mxu0 %v872
    %892 = vmatprep.subr.bf16.mxu0 0
    %893 = vmatpush1.bf16.msra.mxu0 %v873
    %894 = vmatprep.subr.bf16.mxu0 0
    %895 = vmatpush1.bf16.msra.mxu0 %v874
    %896 = vmatprep.subr.bf16.mxu0 0
    %897 = vmatpush1.bf16.msra.mxu0 %v875
    %898 = vmatprep.subr.bf16.mxu0 0
    %899 = vmatpush1.bf16.msra.mxu0 %v876
    %900 = vmatprep.subr.bf16.mxu0 0
    %901 = vmatpush1.bf16.msra.mxu0 %v877
    %902 = vmatprep.subr.bf16.mxu0 0
    %903 = vmatpush1.bf16.msra.mxu0 0
    %904 = vmatprep.subr.bf16.mxu0 0
    %905 = vmatpush1.bf16.msra.mxu0 0
    %906 = vmatprep.subr.bf16.mxu0 0
    %907 = vmatpush1.bf16.msra.mxu0 0
    %908 = vmatprep.subr.bf16.mxu0 0
    %909 = vmatpush1.bf16.msra.mxu0 0
    %910 = vmatprep.subr.bf16.mxu0 0
    %911 = vmatpush1.bf16.msra.mxu0 0
    %912 = vmatprep.subr.bf16.mxu0 0
    %913 = vmatpush1.bf16.msra.mxu0 0
    %914 = vmatprep.subr.bf16.mxu0 0
    %915 = vmatpush1.bf16.msra.mxu0 0
    %916 = vmatprep.subr.bf16.mxu0 0
    %917 = vmatpush1.bf16.msra.mxu0 0
    %918 = vmatprep.mubr.bf16.mxu0 0
    %919 = vmatmul.mubr.bf16.gmra.mrb[0].mxu0 %v814
    %v920 = vpop.f32.mrb[0].mxu0
    %v921 = vadd.f32 %v836, %v920
    %v922 = vpop.f32.mrb[0].mxu0
    %v923 = vpop.f32.mrb[0].mxu0
    %v924 = vadd.f32 %v836, %v923
    %v925 = vpop.f32.mrb[0].mxu0
    %926 = vdwg.mxu0
    %v927 = vld [vmem:[%s6] sm:$0x1]
    %v929 = vlaneseq
    %v930 = vshrl.u32 %v929, 7
    %v931 = vsub.s32 0, %v930
    %v932 = vrot.slane %v927, %v931
    %v934 = vmul.f32 %v921, %v932
    %v935 = vmul.f32 %v924, %v932
    %v936 = vadd.f32 %v934, %v69
    %v937 = vadd.f32 %v935, %v70
    %938 = vst [vmem:[#allocation9] sm:$0xff] %v936
    %939 = vst [vmem:[#allocation9 + $0x8] sm:$0xff] %v937
    // Predicated region
    $region42: #{tpu_custom_call.1} parent=1 // pred_check
      _
    $region43: #{tpu_custom_call.1} parent=1 // pred_check_branch
      %941 = sbr.rel (0) target = $region45
    $region44: #{tpu_custom_call.1} parent=1 // pred_region
      %s943 = ssub.s32 256, 256
      %944 = vsyncadd [#allocation5], %s943
      %s945 = sshll.u32 [#allocation9], 4
      %s946 = int_to_ptr.vmem [resolvable:$true] %s945
      %951 = dma.vmem_to_hbm [thread:$0]  %s946, 256, %s7, [#allocation5], 128, 128, 8
    $region45: #{tpu_custom_call.1} parent=1 // pred_fallthru
      _
    // Predicated region
    $region46: #{tpu_custom_call.1} parent=1 // pred_check
      _
    $region47: #{tpu_custom_call.1} parent=1 // pred_check_branch
      %953 = sbr.rel (0) target = $region49
    $region48: #{tpu_custom_call.1} parent=1 // pred_region
      %954 = dma.done [#allocation5], 256
    $region49: #{tpu_custom_call.1} parent=1 // pred_fallthru
      _
    %955 = vsyncpa [#allocation4], 1
    %956 = vsyncpa [#allocation7], 1
    %957 = vsyncpa [#allocation5], 1

</llo_original>
